<compile_context>
chip_gen: v6e
topology: v6e:2x2x1
jax: 0.10.0
libtpu: 0.0.40
codegen_flags: <defaults>
</compile_context>

<pallas_src>
import functools

import jax
import jax.numpy as jnp
from jax.experimental import pallas as pl
from jax.experimental.pallas import tpu as pltpu

_LANE = 128      # lane tile (last dim)
_SUBLANE = 8     # sublane tile (second-to-last dim)


def _round_up(n, m):
    return ((n + m - 1) // m) * m


# --------------------------------------------------------------------------- #
# Kernel
# --------------------------------------------------------------------------- #
def _mlp_kernel(x_ref, w1_ref, b1_ref, w2_ref, b2_ref, o_ref, acc_ref):
    """One (batch-tile, K-tile) grid step of the fused MLP.

    x_ref : (tb, tk)  f32   (cast to bf16 in-kernel)
    w1_ref: (tk, Hp)  bf16      b1_ref: (1, Hp) f32
    w2_ref: (Hp, Cp)  bf16      b2_ref: (1, Cp) f32
    o_ref : (tb, Cp)  f32   (Cp multiple of 128 -> lane-dense stores)
    acc_ref: (tb, Hp) f32 VMEM scratch, persists across the K axis.
    """
    k = pl.program_id(1)

    @pl.when(k == 0)
    def _init():
        acc_ref[...] = jnp.zeros_like(acc_ref)

    # f32 x straight from HBM; bf16 cast on the VPU (plenty of slack here).
    x = x_ref[...].astype(jnp.bfloat16)
    acc_ref[...] += jnp.dot(x, w1_ref[...], preferred_element_type=jnp.float32)

    @pl.when(k == pl.num_programs(1) - 1)
    def _finalize():
        h = jnp.maximum(acc_ref[...] + b1_ref[...], 0.0)        # bias + ReLU in f32
        out = jnp.dot(h.astype(w2_ref.dtype), w2_ref[...],
                      preferred_element_type=jnp.float32)
        o_ref[...] = (out + b2_ref[...]).astype(o_ref.dtype)


# --------------------------------------------------------------------------- #
# One-time parameter preparation (hoisted out of the forward hot path)
# --------------------------------------------------------------------------- #
def prepare_params(w1, b1, w2, b2, *, max_batch_tile=256,
                   vmem_budget_bytes=24 * 1024 * 1024):
    """Cast weights to bf16 and zero-pad to MXU-friendly tiles, once.

    Returns (padded_params, meta).  meta carries the static tiling info used by
    linear_model_forward, so the forward never re-reads the f32 weights.
    """
    D, H = w1.shape
    C = w2.shape[1]
    Hp = _round_up(H, _LANE)
    Cp = _round_up(C, _LANE)

    # K tile: largest 128-multiple slice such that the double-buffered bf16 W1
    # slice plus the double-buffered f32 x slice (worst-case batch tile) fit the
    # VMEM budget. If all of D fits, use a single full-extent K tile (no D pad).
    per_row_bytes = 2 * 4 * max_batch_tile + 2 * 2 * Hp     # x bufs + W1 bufs
    tk_max = max(_LANE, (vmem_budget_bytes // per_row_bytes) // _LANE * _LANE)
    if _round_up(D, _LANE) <= tk_max:
        Dp, tk = D, D                      # single K tile, x stays unpadded in D
    else:
        tk = tk_max
        Dp = _round_up(D, tk)

    w1_p = jnp.zeros((Dp, Hp), jnp.bfloat16).at[:D, :H].set(w1.astype(jnp.bfloat16))
    w2_p = jnp.zeros((Hp, Cp), jnp.bfloat16).at[:H, :C].set(w2.astype(jnp.bfloat16))
    b1_p = jnp.zeros((1, Hp), jnp.float32).at[0, :H].set(b1.astype(jnp.float32))
    b2_p = jnp.zeros((1, Cp), jnp.float32).at[0, :C].set(b2.astype(jnp.float32))

    meta = dict(D=D, H=H, C=C, Dp=Dp, Hp=Hp, Cp=Cp, tk=tk,
                max_batch_tile=max_batch_tile)
    return (w1_p, b1_p, w2_p, b2_p), meta


def _choose_batch_tile(B, max_tile):
    """Pick tb minimizing batch padding; among ties prefer >=2 tiles (so the
    'parallel' axis can use both v7x TensorCores), then the larger tile."""
    if B <= _SUBLANE:
        return B                           # single full-extent tile (legal block)
    best_key, best_tb = None, None
    for tb in range(_SUBLANE, min(max_tile, _round_up(B, _SUBLANE)) + 1, _SUBLANE):
        bp = _round_up(B, tb)
        key = (bp - B, 0 if bp // tb >= 2 else 1, -tb)
        if best_key is None or key < best_key:
            best_key, best_tb = key, tb
    return best_tb


# --------------------------------------------------------------------------- #
# Forward
# --------------------------------------------------------------------------- #
def linear_model_forward(x_nchw, params, meta):
    """Pallas forward of LinearModel: Flatten -> Linear -> ReLU -> Linear."""
    w1_p, b1_p, w2_p, b2_p = params
    D, C = meta["D"], meta["C"]
    Dp, Hp, Cp, tk = meta["Dp"], meta["Hp"], meta["Cp"], meta["tk"]

    B = x_nchw.shape[0]
    x2d = x_nchw.reshape(B, D)             # nn.Flatten; stays f32 (cast in-kernel)

    tb = _choose_batch_tile(B, meta["max_batch_tile"])
    Bp = _round_up(B, tb)
    if Bp != B or Dp != D:
        # Zero-pad only when the grid actually needs it (reduction padding must
        # be explicit zeros; padded batch rows are sliced off below).
        x2d = jnp.zeros((Bp, Dp), x2d.dtype).at[:B, :D].set(x2d)

    nb, nk = Bp // tb, Dp // tk
    grid = (nb, nk)

    flops = 2 * Bp * Dp * Hp + 2 * Bp * Hp * Cp
    bytes_accessed = (Bp * Dp * 4 + nb * Dp * Hp * 2 + Hp * Cp * 2
                      + Hp * 4 + Cp * 4 + Bp * Cp * 4)

    out_padded = pl.pallas_call(
        _mlp_kernel,
        out_shape=jax.ShapeDtypeStruct((Bp, Cp), jnp.float32),
        grid_spec=pltpu.PrefetchScalarGridSpec(
            num_scalar_prefetch=0,
            grid=grid,
            in_specs=[
                pl.BlockSpec((tb, tk), lambda i, k: (i, k)),   # x: f32, per (i, k) tile
                pl.BlockSpec((tk, Hp), lambda i, k: (k, 0)),   # W1: K-tiled bf16
                pl.BlockSpec((1, Hp), lambda i, k: (0, 0)),    # b1: VMEM-resident
                pl.BlockSpec((Hp, Cp), lambda i, k: (0, 0)),   # W2: VMEM-resident
                pl.BlockSpec((1, Cp), lambda i, k: (0, 0)),    # b2: VMEM-resident
            ],
            out_specs=pl.BlockSpec((tb, Cp), lambda i, k: (i, 0)),
            scratch_shapes=[pltpu.VMEM((tb, Hp), jnp.float32)],   # hidden accumulator
        ),
        compiler_params=pltpu.CompilerParams(
            # batch axis parallel (>=2 tiles when B >= 16 so v7x's 2 TCs both get
            # work; for the grid=(1,1) demo below this is a no-op), K axis is the
            # carried reduction.
            dimension_semantics=("parallel", "arbitrary"),
            vmem_limit_bytes=48 * 1024 * 1024,
        ),
        cost_estimate=pl.CostEstimate(
            flops=flops, transcendentals=0, bytes_accessed=bytes_accessed),
    )(x2d, w1_p, b1_p, w2_p, b2_p)

    return out_padded[:B, :C]


def init_params(key, input_dim, hidden_size, num_classes, dtype=jnp.float32):
    """Deterministic init mimicking nn.Linear default (uniform +/- 1/sqrt(fan_in))."""
    k1, k2, k3, k4 = jax.random.split(key, 4)
    lim1 = 1.0 / jnp.sqrt(jnp.asarray(input_dim, dtype))
    lim2 = 1.0 / jnp.sqrt(jnp.asarray(hidden_size, dtype))
    w1 = jax.random.uniform(k1, (input_dim, hidden_size), dtype, -lim1, lim1)
    b1 = jax.random.uniform(k2, (hidden_size,), dtype, -lim1, lim1)
    w2 = jax.random.uniform(k3, (hidden_size, num_classes), dtype, -lim2, lim2)
    b2 = jax.random.uniform(k4, (num_classes,), dtype, -lim2, lim2)
    return w1, b1, w2, b2


if __name__ == "__main__":
    key = jax.random.PRNGKey(0)
    kx, kp = jax.random.split(key)

    # x: (batch=2, channels=4, spatial=16x16) -> input_dim = 4*16*16 = 1024
    B, Cin, Hs, Ws = 2, 4, 16, 16
    input_dim = Cin * Hs * Ws
    hidden_size = 32
    num_classes = 10

    x = jax.random.normal(kx, (B, Cin, Hs, Ws), dtype=jnp.float32)
    w1, b1, w2, b2 = init_params(kp, input_dim, hidden_size, num_classes)

    # One-time weight prep (outside the per-call hot path), then a jitted forward
    # that only reads x and the already-padded bf16 weights.
    params, meta = prepare_params(w1, b1, w2, b2)
    params = jax.tree_util.tree_map(jax.block_until_ready, params)
    fwd = jax.jit(functools.partial(linear_model_forward, params=params, meta=meta))

    out = jax.block_until_ready(fwd(x))
    assert out.shape == (B, num_classes)

    # matched-precision reference (bf16 MXU operands, f32 accumulate) -> tight check
    x2d = x.reshape(B, -1)
    h_ref = jnp.maximum(
        jnp.dot(x2d.astype(jnp.bfloat16), w1.astype(jnp.bfloat16),
                preferred_element_type=jnp.float32) + b1, 0.0)
    ref_bf16 = jnp.dot(h_ref.astype(jnp.bfloat16), w2.astype(jnp.bfloat16),
                       preferred_element_type=jnp.float32) + b2
    assert jnp.allclose(out, ref_bf16, atol=1e-4, rtol=1e-4)

    # full-f32 reference -> loose sanity check (bf16 weight rounding error only)
    # TODO(synk): if strict f32 parity with the PyTorch module is required, drop
    # the bf16 weight cast in prepare_params (trades DMA bytes for exactness).
    ref_f32 = jnp.maximum(x2d @ w1 + b1, 0.0) @ w2 + b2
    assert jnp.allclose(out, ref_f32, atol=1e-1, rtol=1e-1)

    print("KERNEL_OK")
</pallas_src>

<mosaic_0001>
module attributes {stable_mosaic.version = 11 : i64} {
  func.func @_mlp_kernel(%arg0: i32, %arg1: i32, %arg2: memref<2x1024xf32, #tpu.memory_space<vmem>>, %arg3: memref<1024x128xbf16, #tpu.memory_space<vmem>>, %arg4: memref<1x128xf32, #tpu.memory_space<vmem>>, %arg5: memref<128x128xbf16, #tpu.memory_space<vmem>>, %arg6: memref<1x128xf32, #tpu.memory_space<vmem>>, %arg7: memref<2x128xf32, #tpu.memory_space<vmem>>, %arg8: memref<2x128xf32, #tpu.memory_space<vmem>>) attributes {dimension_semantics = [#tpu.dimension_semantics<parallel>, #tpu.dimension_semantics<arbitrary>], iteration_bounds = array<i64: 1, 1>, scalar_prefetch = 0 : i64, scratch_operands = 1 : i64, tpu.core_type = #tpu.core_type<tc>, window_params = [{transform_indices = @transform_0, window_bounds = array<i64: 2, 1024>}, {transform_indices = @transform_1, window_bounds = array<i64: 1024, 128>}, {pipeline_mode = #tpu.pipeline_mode<synchronous>, transform_indices = @transform_2, window_bounds = array<i64: 1, 128>}, {pipeline_mode = #tpu.pipeline_mode<synchronous>, transform_indices = @transform_3, window_bounds = array<i64: 128, 128>}, {pipeline_mode = #tpu.pipeline_mode<synchronous>, transform_indices = @transform_4, window_bounds = array<i64: 1, 128>}, {transform_indices = @transform_5, window_bounds = array<i64: 2, 128>}]} {
    %c0_i32 = arith.constant 0 : i32
    %0 = arith.cmpi eq, %arg1, %c0_i32 : i32
    %1 = arith.extui %0 : i1 to i32
    %c0_i32_0 = arith.constant 0 : i32
    %2 = arith.cmpi ne, %1, %c0_i32_0 : i32
    scf.if %2 {
      %cst_10 = arith.constant 0.000000e+00 : f32
      %13 = vector.broadcast %cst_10 : f32 to vector<2x128xf32>
      %c0_11 = arith.constant 0 : index
      %c0_12 = arith.constant 0 : index
      %14 = vector.load %arg8[%c0_11, %c0_12] : memref<2x128xf32, #tpu.memory_space<vmem>>, vector<2x128xf32>
      tpu.vector_store %arg8[%c0_11, %c0_12], %13 {strides = array<i32>} : memref<2x128xf32, #tpu.memory_space<vmem>>, vector<2x128xf32>,
    } else {
    }
    %c0 = arith.constant 0 : index
    %c0_1 = arith.constant 0 : index
    %3 = vector.load %arg2[%c0, %c0_1] : memref<2x1024xf32, #tpu.memory_space<vmem>>, vector<2x1024xf32>
    %4 = arith.truncf %3 : vector<2x1024xf32> to vector<2x1024xbf16>
    %c0_2 = arith.constant 0 : index
    %c0_3 = arith.constant 0 : index
    %5 = vector.load %arg8[%c0_2, %c0_3] : memref<2x128xf32, #tpu.memory_space<vmem>>, vector<2x128xf32>
    %c0_4 = arith.constant 0 : index
    %c0_5 = arith.constant 0 : index
    %6 = vector.load %arg3[%c0_4, %c0_5] : memref<1024x128xbf16, #tpu.memory_space<vmem>>, vector<1024x128xbf16>
    %cst = arith.constant dense<0.000000e+00> : vector<2x128xf32>
    %7 = tpu.matmul %4, %6, %cst {dimension_numbers = #tpu.dot_dimension_numbers<[1], [0], [0], [1], [0, 0, 1, 1], [], []>} : vector<2x1024xbf16>, vector<1024x128xbf16>, vector<2x128xf32> -> vector<2x128xf32>
    %8 = arith.addf %5, %7 : vector<2x128xf32>
    %c0_6 = arith.constant 0 : index
    %c0_7 = arith.constant 0 : index
    %9 = vector.load %arg8[%c0_6, %c0_7] : memref<2x128xf32, #tpu.memory_space<vmem>>, vector<2x128xf32>
    tpu.vector_store %arg8[%c0_6, %c0_7], %8 {strides = array<i32>} : memref<2x128xf32, #tpu.memory_space<vmem>>, vector<2x128xf32>,
    %c0_i32_8 = arith.constant 0 : i32
    %10 = arith.cmpi eq, %arg1, %c0_i32_8 : i32
    %11 = arith.extui %10 : i1 to i32
    %c0_i32_9 = arith.constant 0 : i32
    %12 = arith.cmpi ne, %11, %c0_i32_9 : i32
    scf.if %12 {
      %c0_10 = arith.constant 0 : index
      %c0_11 = arith.constant 0 : index
      %13 = vector.load %arg8[%c0_10, %c0_11] : memref<2x128xf32, #tpu.memory_space<vmem>>, vector<2x128xf32>
      %c0_12 = arith.constant 0 : index
      %c0_13 = arith.constant 0 : index
      %14 = vector.load %arg4[%c0_12, %c0_13] : memref<1x128xf32, #tpu.memory_space<vmem>>, vector<1x128xf32>
      %15 = vector.broadcast %14 : vector<1x128xf32> to vector<2x128xf32>
      %16 = arith.addf %13, %15 : vector<2x128xf32>
      %cst_14 = arith.constant 0.000000e+00 : f32
      %17 = vector.broadcast %cst_14 : f32 to vector<2x128xf32>
      %18 = arith.maximumf %16, %17 : vector<2x128xf32>
      %19 = arith.truncf %18 : vector<2x128xf32> to vector<2x128xbf16>
      %c0_15 = arith.constant 0 : index
      %c0_16 = arith.constant 0 : index
      %20 = vector.load %arg5[%c0_15, %c0_16] : memref<128x128xbf16, #tpu.memory_space<vmem>>, vector<128x128xbf16>
      %cst_17 = arith.constant dense<0.000000e+00> : vector<2x128xf32>
      %21 = tpu.matmul %19, %20, %cst_17 {dimension_numbers = #tpu.dot_dimension_numbers<[1], [0], [0], [1], [0, 0, 1, 1], [], []>} : vector<2x128xbf16>, vector<128x128xbf16>, vector<2x128xf32> -> vector<2x128xf32>
      %c0_18 = arith.constant 0 : index
      %c0_19 = arith.constant 0 : index
      %22 = vector.load %arg6[%c0_18, %c0_19] : memref<1x128xf32, #tpu.memory_space<vmem>>, vector<1x128xf32>
      %23 = vector.broadcast %22 : vector<1x128xf32> to vector<2x128xf32>
      %24 = arith.addf %21, %23 : vector<2x128xf32>
      %c0_20 = arith.constant 0 : index
      %c0_21 = arith.constant 0 : index
      %25 = vector.load %arg7[%c0_20, %c0_21] : memref<2x128xf32, #tpu.memory_space<vmem>>, vector<2x128xf32>
      tpu.vector_store %arg7[%c0_20, %c0_21], %24 {strides = array<i32>} : memref<2x128xf32, #tpu.memory_space<vmem>>, vector<2x128xf32>,
    } else {
    }
    return
  }
  func.func @transform_0(%arg0: i32, %arg1: i32) -> (i32, i32) {
    %c0_i32 = arith.constant 0 : i32
    return %arg0, %arg1 : i32, i32
  }
  func.func @transform_1(%arg0: i32, %arg1: i32) -> (i32, i32) {
    %c0_i32 = arith.constant 0 : i32
    %c0_i32_0 = arith.constant 0 : i32
    return %arg1, %c0_i32 : i32, i32
  }
  func.func @transform_2(%arg0: i32, %arg1: i32) -> (i32, i32) {
    %c0_i32 = arith.constant 0 : i32
    %c0_i32_0 = arith.constant 0 : i32
    %c0_i32_1 = arith.constant 0 : i32
    return %c0_i32, %c0_i32_0 : i32, i32
  }
  func.func @transform_3(%arg0: i32, %arg1: i32) -> (i32, i32) {
    %c0_i32 = arith.constant 0 : i32
    %c0_i32_0 = arith.constant 0 : i32
    %c0_i32_1 = arith.constant 0 : i32
    return %c0_i32, %c0_i32_0 : i32, i32
  }
  func.func @transform_4(%arg0: i32, %arg1: i32) -> (i32, i32) {
    %c0_i32 = arith.constant 0 : i32
    %c0_i32_0 = arith.constant 0 : i32
    %c0_i32_1 = arith.constant 0 : i32
    return %c0_i32, %c0_i32_0 : i32, i32
  }
  func.func @transform_5(%arg0: i32, %arg1: i32) -> (i32, i32) {
    %c0_i32 = arith.constant 0 : i32
    %c0_i32_0 = arith.constant 0 : i32
    return %arg0, %c0_i32 : i32, i32
  }
}

</mosaic_0001>

<llo_original>
// kernel: linear_model_forward.1
$region0: #{linear_model_forward.1}
  #allocation0 [shape = 'u32[]', space=smem, size = 0x4, offset = 0x4, fixed_abs, tag = 'smem constant byte address 0x4 - core index']
  #allocation1 [shape = 'u32[144,128]{1,0:T(1,128)}', space=vmem, size = 0x12000, scoped, tag = 'internal scratch']
  #allocation2 [shape = 'f32[2,128]{1,0:T(2,128)}', space=vmem, size = 0x400, scoped, tag = 'scratch operand']
  %s0 = inlined_call_operand.vmem [shape: f32[2,1024], index: 0, kind: input, shape index: {}]
  %s1 = inlined_call_operand.hbm [shape: bf16[1024,128], index: 1, kind: input, shape index: {}]
  %s2 = inlined_call_operand.vmem [shape: f32[1,128], index: 2, kind: input, shape index: {}]
  %s3 = inlined_call_operand.vmem [shape: bf16[128,128], index: 3, kind: input, shape index: {}]
  %s4 = inlined_call_operand.vmem [shape: f32[1,128], index: 4, kind: input, shape index: {}]
  %s5 = inlined_call_operand.hbm [shape: f32[2,128], index: 5, kind: output, shape index: {}]
  %s6 = sld [smem:[#allocation0]]
  $region42: #{linear_model_forward.1} parent=0
    _
  %s8 = ssub.s32 1, %s6
  %s9 = scalar_select 0, %s8, %s6
  $region1: #{linear_model_forward.1} parent=0
    #allocation3 [shape = 'u8[262144]{0}', space=vmem, size = 0x40000, scoped, tag = 'input window, operand 1, single buffered']
    #allocation4 [shape = 's32[1]{0}', space=sflag, size = 0x4, scoped, tag = 'scoped memory for linear_model_forward.1']
    #allocation5 [shape = 's32[1]{0}', space=sflag, size = 0x4, scoped, tag = 'scoped memory for linear_model_forward.1']
    #allocation6 [shape = 'u8[1024]{0}', space=vmem, size = 0x400, scoped, tag = 'output window, operand 0, single buffered']
    %10 = vsyncpa [#allocation4], 0
    %11 = vsyncpa [#allocation5], 0
    // Predicated region
    $region2: #{linear_model_forward.1} parent=1 // pred_check
      _
    $region3: #{linear_model_forward.1} parent=1 // pred_check_branch
      %13 = sbr.rel (0) target = $region5
    $region4: #{linear_model_forward.1} parent=1 // pred_region
      _
    $region5: #{linear_model_forward.1} parent=1 // pred_fallthru
      _
    // Predicated region
    $region6: #{linear_model_forward.1} parent=1 // pred_check
      _
    $region7: #{linear_model_forward.1} parent=1 // pred_check_branch
      %15 = sbr.rel (0) target = $region9
    $region8: #{linear_model_forward.1} parent=1 // pred_region
      %s17 = ssub.s32 8192, 8192
      %18 = vsyncadd [#allocation4], %s17
      %s19 = sshll.u32 [#allocation3], 4
      %s20 = int_to_ptr.vmem [resolvable:$true] %s19
      %25 = dma.hbm_to_vmem [thread:$0]  %s1, 8192, %s20, [#allocation4], 64, 64, 4
    $region9: #{linear_model_forward.1} parent=1 // pred_fallthru
      _
    // Predicated region
    $region10: #{linear_model_forward.1} parent=1 // pred_check
      _
    $region11: #{linear_model_forward.1} parent=1 // pred_check_branch
      %27 = sbr.rel (0) target = $region13
    $region12: #{linear_model_forward.1} parent=1 // pred_region
      _
    $region13: #{linear_model_forward.1} parent=1 // pred_fallthru
      _
    // Predicated region
    $region14: #{linear_model_forward.1} parent=1 // pred_check
      _
    $region15: #{linear_model_forward.1} parent=1 // pred_check_branch
      %29 = sbr.rel (0) target = $region17
    $region16: #{linear_model_forward.1} parent=1 // pred_region
      _
    $region17: #{linear_model_forward.1} parent=1 // pred_fallthru
      _
    // Predicated region
    $region18: #{linear_model_forward.1} parent=1 // pred_check
      _
    $region19: #{linear_model_forward.1} parent=1 // pred_check_branch
      %31 = sbr.rel (0) target = $region21
    $region20: #{linear_model_forward.1} parent=1 // pred_region
      _
    $region21: #{linear_model_forward.1} parent=1 // pred_fallthru
      _
    // Predicated region
    $region22: #{linear_model_forward.1} parent=1 // pred_check
      _
    $region23: #{linear_model_forward.1} parent=1 // pred_check_branch
      %33 = sbr.rel (0) target = $region25
    $region24: #{linear_model_forward.1} parent=1 // pred_region
      %34 = dma.done [#allocation4], 8192
    $region25: #{linear_model_forward.1} parent=1 // pred_fallthru
      _
    %p36 = scmp.eq.s32.totalorder 0, 0
    // Predicated region
    $region26: #{linear_model_forward.1} parent=1 // pred_check
      %p37 = pneg %p36
    $region27: #{linear_model_forward.1} parent=1 // pred_check_branch
      %39 = sbr.rel (%p37) target = $region29
    $region28: #{linear_model_forward.1} parent=1 // pred_region
      %40 = vst [vmem:[#allocation2] sm:$0x3] 0.0
    $region29: #{linear_model_forward.1} parent=1 // pred_fallthru
      _
    %v41 = vld [vmem:[%s0] sm:$0xff]
    %v42 = vld [vmem:[%s0 + $0x8] sm:$0xff]
    %v45 = vcombine.high %v41, %v41
    %v47 = vunpack.c.l.s4 1983009808
    %v48 = vunpack.c.0.s8 %v47
    %v49 = vlaneseq
    %v50 = vshrl.u32 %v49, 7
    %v51 = vsub.s32 %v48, %v50
    %v52 = vrot.slane %v41, %v51
    %v54 = vunpack.c.l.s4 1983009808
    %v55 = vunpack.c.0.s8 %v54
    %v56 = vlaneseq
    %v57 = vshrl.u32 %v56, 7
    %v58 = vsub.s32 %v55, %v57
    %v59 = vrot.slane %v45, %v58
    %v60 = vcombine.high %v52, %v52
    %v61 = vcombine.high %v59, %v59
    %v62 = vcombine.high %v42, %v42
    %v64 = vunpack.c.l.s4 1983009808
    %v65 = vunpack.c.0.s8 %v64
    %v66 = vlaneseq
    %v67 = vshrl.u32 %v66, 7
    %v68 = vsub.s32 %v65, %v67
    %v69 = vrot.slane %v42, %v68
    %v71 = vunpack.c.l.s4 1983009808
    %v72 = vunpack.c.0.s8 %v71
    %v73 = vlaneseq
    %v74 = vshrl.u32 %v73, 7
    %v75 = vsub.s32 %v72, %v74
    %v76 = vrot.slane %v62, %v75
    %v77 = vcombine.high %v69, %v69
    %v78 = vcombine.high %v76, %v76
    %v87 = vpack.c.bf16 %v52, %v52
    %v88 = vpack.c.bf16 %v60, %v60
    %v89 = vpack.c.bf16 %v59, %v59
    %v90 = vpack.c.bf16 %v61, %v61
    %v91 = vpack.c.bf16 %v69, %v69
    %v92 = vpack.c.bf16 %v77, %v77
    %v93 = vpack.c.bf16 %v76, %v76
    %v94 = vpack.c.bf16 %v78, %v78
    %v95 = vld [vmem:[#allocation2] sm:$0x3]
    %v96 = vld [vmem:[#allocation3] sm:$0xf]
    %v97 = vld [vmem:[#allocation3 + $0x4] sm:$0xf]
    %v98 = vld [vmem:[#allocation3 + $0x8] sm:$0xf]
    %v99 = vld [vmem:[#allocation3 + $0xc] sm:$0xf]
    %v100 = vld [vmem:[#allocation3 + $0x10] sm:$0xf]
    %v101 = vld [vmem:[#allocation3 + $0x14] sm:$0xf]
    %v102 = vld [vmem:[#allocation3 + $0x18] sm:$0xf]
    %v103 = vld [vmem:[#allocation3 + $0x1c] sm:$0xf]
    %v104 = vld [vmem:[#allocation3 + $0x20] sm:$0xf]
    %v105 = vld [vmem:[#allocation3 + $0x24] sm:$0xf]
    %v106 = vld [vmem:[#allocation3 + $0x28] sm:$0xf]
    %v107 = vld [vmem:[#allocation3 + $0x2c] sm:$0xf]
    %v108 = vld [vmem:[#allocation3 + $0x30] sm:$0xf]
    %v109 = vld [vmem:[#allocation3 + $0x34] sm:$0xf]
    %v110 = vld [vmem:[#allocation3 + $0x38] sm:$0xf]
    %v111 = vld [vmem:[#allocation3 + $0x3c] sm:$0xf]
    %v112 = vld [vmem:[#allocation3 + $0x40] sm:$0xf]
    %v113 = vld [vmem:[#allocation3 + $0x44] sm:$0xf]
    %v114 = vld [vmem:[#allocation3 + $0x48] sm:$0xf]
    %v115 = vld [vmem:[#allocation3 + $0x4c] sm:$0xf]
    %v116 = vld [vmem:[#allocation3 + $0x50] sm:$0xf]
    %v117 = vld [vmem:[#allocation3 + $0x54] sm:$0xf]
    %v118 = vld [vmem:[#allocation3 + $0x58] sm:$0xf]
    %v119 = vld [vmem:[#allocation3 + $0x5c] sm:$0xf]
    %v120 = vld [vmem:[#allocation3 + $0x60] sm:$0xf]
    %v121 = vld [vmem:[#allocation3 + $0x64] sm:$0xf]
    %v122 = vld [vmem:[#allocation3 + $0x68] sm:$0xf]
    %v123 = vld [vmem:[#allocation3 + $0x6c] sm:$0xf]
    %v124 = vld [vmem:[#allocation3 + $0x70] sm:$0xf]
    %v125 = vld [vmem:[#allocation3 + $0x74] sm:$0xf]
    %v126 = vld [vmem:[#allocation3 + $0x78] sm:$0xf]
    %v127 = vld [vmem:[#allocation3 + $0x7c] sm:$0xf]
    %v128 = vld [vmem:[#allocation3 + $0x80] sm:$0xf]
    %v129 = vld [vmem:[#allocation3 + $0x84] sm:$0xf]
    %v130 = vld [vmem:[#allocation3 + $0x88] sm:$0xf]
    %v131 = vld [vmem:[#allocation3 + $0x8c] sm:$0xf]
    %v132 = vld [vmem:[#allocation3 + $0x90] sm:$0xf]
    %v133 = vld [vmem:[#allocation3 + $0x94] sm:$0xf]
    %v134 = vld [vmem:[#allocation3 + $0x98] sm:$0xf]
    %v135 = vld [vmem:[#allocation3 + $0x9c] sm:$0xf]
    %v136 = vld [vmem:[#allocation3 + $0xa0] sm:$0xf]
    %v137 = vld [vmem:[#allocation3 + $0xa4] sm:$0xf]
    %v138 = vld [vmem:[#allocation3 + $0xa8] sm:$0xf]
    %v139 = vld [vmem:[#allocation3 + $0xac] sm:$0xf]
    %v140 = vld [vmem:[#allocation3 + $0xb0] sm:$0xf]
    %v141 = vld [vmem:[#allocation3 + $0xb4] sm:$0xf]
    %v142 = vld [vmem:[#allocation3 + $0xb8] sm:$0xf]
    %v143 = vld [vmem:[#allocation3 + $0xbc] sm:$0xf]
    %v144 = vld [vmem:[#allocation3 + $0xc0] sm:$0xf]
    %v145 = vld [vmem:[#allocation3 + $0xc4] sm:$0xf]
    %v146 = vld [vmem:[#allocation3 + $0xc8] sm:$0xf]
    %v147 = vld [vmem:[#allocation3 + $0xcc] sm:$0xf]
    %v148 = vld [vmem:[#allocation3 + $0xd0] sm:$0xf]
    %v149 = vld [vmem:[#allocation3 + $0xd4] sm:$0xf]
    %v150 = vld [vmem:[#allocation3 + $0xd8] sm:$0xf]
    %v151 = vld [vmem:[#allocation3 + $0xdc] sm:$0xf]
    %v152 = vld [vmem:[#allocation3 + $0xe0] sm:$0xf]
    %v153 = vld [vmem:[#allocation3 + $0xe4] sm:$0xf]
    %v154 = vld [vmem:[#allocation3 + $0xe8] sm:$0xf]
    %v155 = vld [vmem:[#allocation3 + $0xec] sm:$0xf]
    %v156 = vld [vmem:[#allocation3 + $0xf0] sm:$0xf]
    %v157 = vld [vmem:[#allocation3 + $0xf4] sm:$0xf]
    %v158 = vld [vmem:[#allocation3 + $0xf8] sm:$0xf]
    %v159 = vld [vmem:[#allocation3 + $0xfc] sm:$0xf]
    %v160 = vld [vmem:[#allocation3 + $0x100] sm:$0xf]
    %v161 = vld [vmem:[#allocation3 + $0x104] sm:$0xf]
    %v162 = vld [vmem:[#allocation3 + $0x108] sm:$0xf]
    %v163 = vld [vmem:[#allocation3 + $0x10c] sm:$0xf]
    %v164 = vld [vmem:[#allocation3 + $0x110] sm:$0xf]
    %v165 = vld [vmem:[#allocation3 + $0x114] sm:$0xf]
    %v166 = vld [vmem:[#allocation3 + $0x118] sm:$0xf]
    %v167 = vld [vmem:[#allocation3 + $0x11c] sm:$0xf]
    %v168 = vld [vmem:[#allocation3 + $0x120] sm:$0xf]
    %v169 = vld [vmem:[#allocation3 + $0x124] sm:$0xf]
    %v170 = vld [vmem:[#allocation3 + $0x128] sm:$0xf]
    %v171 = vld [vmem:[#allocation3 + $0x12c] sm:$0xf]
    %v172 = vld [vmem:[#allocation3 + $0x130] sm:$0xf]
    %v173 = vld [vmem:[#allocation3 + $0x134] sm:$0xf]
    %v174 = vld [vmem:[#allocation3 + $0x138] sm:$0xf]
    %v175 = vld [vmem:[#allocation3 + $0x13c] sm:$0xf]
    %v176 = vld [vmem:[#allocation3 + $0x140] sm:$0xf]
    %v177 = vld [vmem:[#allocation3 + $0x144] sm:$0xf]
    %v178 = vld [vmem:[#allocation3 + $0x148] sm:$0xf]
    %v179 = vld [vmem:[#allocation3 + $0x14c] sm:$0xf]
    %v180 = vld [vmem:[#allocation3 + $0x150] sm:$0xf]
    %v181 = vld [vmem:[#allocation3 + $0x154] sm:$0xf]
    %v182 = vld [vmem:[#allocation3 + $0x158] sm:$0xf]
    %v183 = vld [vmem:[#allocation3 + $0x15c] sm:$0xf]
    %v184 = vld [vmem:[#allocation3 + $0x160] sm:$0xf]
    %v185 = vld [vmem:[#allocation3 + $0x164] sm:$0xf]
    %v186 = vld [vmem:[#allocation3 + $0x168] sm:$0xf]
    %v187 = vld [vmem:[#allocation3 + $0x16c] sm:$0xf]
    %v188 = vld [vmem:[#allocation3 + $0x170] sm:$0xf]
    %v189 = vld [vmem:[#allocation3 + $0x174] sm:$0xf]
    %v190 = vld [vmem:[#allocation3 + $0x178] sm:$0xf]
    %v191 = vld [vmem:[#allocation3 + $0x17c] sm:$0xf]
    %v192 = vld [vmem:[#allocation3 + $0x180] sm:$0xf]
    %v193 = vld [vmem:[#allocation3 + $0x184] sm:$0xf]
    %v194 = vld [vmem:[#allocation3 + $0x188] sm:$0xf]
    %v195 = vld [vmem:[#allocation3 + $0x18c] sm:$0xf]
    %v196 = vld [vmem:[#allocation3 + $0x190] sm:$0xf]
    %v197 = vld [vmem:[#allocation3 + $0x194] sm:$0xf]
    %v198 = vld [vmem:[#allocation3 + $0x198] sm:$0xf]
    %v199 = vld [vmem:[#allocation3 + $0x19c] sm:$0xf]
    %v200 = vld [vmem:[#allocation3 + $0x1a0] sm:$0xf]
    %v201 = vld [vmem:[#allocation3 + $0x1a4] sm:$0xf]
    %v202 = vld [vmem:[#allocation3 + $0x1a8] sm:$0xf]
    %v203 = vld [vmem:[#allocation3 + $0x1ac] sm:$0xf]
    %v204 = vld [vmem:[#allocation3 + $0x1b0] sm:$0xf]
    %v205 = vld [vmem:[#allocation3 + $0x1b4] sm:$0xf]
    %v206 = vld [vmem:[#allocation3 + $0x1b8] sm:$0xf]
    %v207 = vld [vmem:[#allocation3 + $0x1bc] sm:$0xf]
    %v208 = vld [vmem:[#allocation3 + $0x1c0] sm:$0xf]
    %v209 = vld [vmem:[#allocation3 + $0x1c4] sm:$0xf]
    %v210 = vld [vmem:[#allocation3 + $0x1c8] sm:$0xf]
    %v211 = vld [vmem:[#allocation3 + $0x1cc] sm:$0xf]
    %v212 = vld [vmem:[#allocation3 + $0x1d0] sm:$0xf]
    %v213 = vld [vmem:[#allocation3 + $0x1d4] sm:$0xf]
    %v214 = vld [vmem:[#allocation3 + $0x1d8] sm:$0xf]
    %v215 = vld [vmem:[#allocation3 + $0x1dc] sm:$0xf]
    %v216 = vld [vmem:[#allocation3 + $0x1e0] sm:$0xf]
    %v217 = vld [vmem:[#allocation3 + $0x1e4] sm:$0xf]
    %v218 = vld [vmem:[#allocation3 + $0x1e8] sm:$0xf]
    %v219 = vld [vmem:[#allocation3 + $0x1ec] sm:$0xf]
    %v220 = vld [vmem:[#allocation3 + $0x1f0] sm:$0xf]
    %v221 = vld [vmem:[#allocation3 + $0x1f4] sm:$0xf]
    %v222 = vld [vmem:[#allocation3 + $0x1f8] sm:$0xf]
    %v223 = vld [vmem:[#allocation3 + $0x1fc] sm:$0xf]
    %v352 = vunpack.c.l.b16 %v96
    %v353 = vunpack.c.l.b16 %v97
    %v354 = vunpack.c.l.b16 %v98
    %v355 = vunpack.c.l.b16 %v99
    %v356 = vunpack.c.l.b16 %v100
    %v357 = vunpack.c.l.b16 %v101
    %v358 = vunpack.c.l.b16 %v102
    %v359 = vunpack.c.l.b16 %v103
    %v360 = vunpack.c.l.b16 %v104
    %v361 = vunpack.c.l.b16 %v105
    %v362 = vunpack.c.l.b16 %v106
    %v363 = vunpack.c.l.b16 %v107
    %v364 = vunpack.c.l.b16 %v108
    %v365 = vunpack.c.l.b16 %v109
    %v366 = vunpack.c.l.b16 %v110
    %v367 = vunpack.c.l.b16 %v111
    %v368 = vunpack.c.l.b16 %v112
    %v369 = vunpack.c.l.b16 %v113
    %v370 = vunpack.c.l.b16 %v114
    %v371 = vunpack.c.l.b16 %v115
    %v372 = vunpack.c.l.b16 %v116
    %v373 = vunpack.c.l.b16 %v117
    %v374 = vunpack.c.l.b16 %v118
    %v375 = vunpack.c.l.b16 %v119
    %v376 = vunpack.c.l.b16 %v120
    %v377 = vunpack.c.l.b16 %v121
    %v378 = vunpack.c.l.b16 %v122
    %v379 = vunpack.c.l.b16 %v123
    %v380 = vunpack.c.l.b16 %v124
    %v381 = vunpack.c.l.b16 %v125
    %v382 = vunpack.c.l.b16 %v126
    %v383 = vunpack.c.l.b16 %v127
    %v384 = vunpack.c.l.b16 %v128
    %v385 = vunpack.c.l.b16 %v129
    %v386 = vunpack.c.l.b16 %v130
    %v387 = vunpack.c.l.b16 %v131
    %v388 = vunpack.c.l.b16 %v132
    %v389 = vunpack.c.l.b16 %v133
    %v390 = vunpack.c.l.b16 %v134
    %v391 = vunpack.c.l.b16 %v135
    %v392 = vunpack.c.l.b16 %v136
    %v393 = vunpack.c.l.b16 %v137
    %v394 = vunpack.c.l.b16 %v138
    %v395 = vunpack.c.l.b16 %v139
    %v396 = vunpack.c.l.b16 %v140
    %v397 = vunpack.c.l.b16 %v141
    %v398 = vunpack.c.l.b16 %v142
    %v399 = vunpack.c.l.b16 %v143
    %v400 = vunpack.c.l.b16 %v144
    %v401 = vunpack.c.l.b16 %v145
    %v402 = vunpack.c.l.b16 %v146
    %v403 = vunpack.c.l.b16 %v147
    %v404 = vunpack.c.l.b16 %v148
    %v405 = vunpack.c.l.b16 %v149
    %v406 = vunpack.c.l.b16 %v150
    %v407 = vunpack.c.l.b16 %v151
    %v408 = vunpack.c.l.b16 %v152
    %v409 = vunpack.c.l.b16 %v153
    %v410 = vunpack.c.l.b16 %v154
    %v411 = vunpack.c.l.b16 %v155
    %v412 = vunpack.c.l.b16 %v156
    %v413 = vunpack.c.l.b16 %v157
    %v414 = vunpack.c.l.b16 %v158
    %v415 = vunpack.c.l.b16 %v159
    %v416 = vunpack.c.l.b16 %v160
    %v417 = vunpack.c.l.b16 %v161
    %v418 = vunpack.c.l.b16 %v162
    %v419 = vunpack.c.l.b16 %v163
    %v420 = vunpack.c.l.b16 %v164
    %v421 = vunpack.c.l.b16 %v165
    %v422 = vunpack.c.l.b16 %v166
    %v423 = vunpack.c.l.b16 %v167
    %v424 = vunpack.c.l.b16 %v168
    %v425 = vunpack.c.l.b16 %v169
    %v426 = vunpack.c.l.b16 %v170
    %v427 = vunpack.c.l.b16 %v171
    %v428 = vunpack.c.l.b16 %v172
    %v429 = vunpack.c.l.b16 %v173
    %v430 = vunpack.c.l.b16 %v174
    %v431 = vunpack.c.l.b16 %v175
    %v432 = vunpack.c.l.b16 %v176
    %v433 = vunpack.c.l.b16 %v177
    %v434 = vunpack.c.l.b16 %v178
    %v435 = vunpack.c.l.b16 %v179
    %v436 = vunpack.c.l.b16 %v180
    %v437 = vunpack.c.l.b16 %v181
    %v438 = vunpack.c.l.b16 %v182
    %v439 = vunpack.c.l.b16 %v183
    %v440 = vunpack.c.l.b16 %v184
    %v441 = vunpack.c.l.b16 %v185
    %v442 = vunpack.c.l.b16 %v186
    %v443 = vunpack.c.l.b16 %v187
    %v444 = vunpack.c.l.b16 %v188
    %v445 = vunpack.c.l.b16 %v189
    %v446 = vunpack.c.l.b16 %v190
    %v447 = vunpack.c.l.b16 %v191
    %v448 = vunpack.c.l.b16 %v192
    %v449 = vunpack.c.l.b16 %v193
    %v450 = vunpack.c.l.b16 %v194
    %v451 = vunpack.c.l.b16 %v195
    %v452 = vunpack.c.l.b16 %v196
    %v453 = vunpack.c.l.b16 %v197
    %v454 = vunpack.c.l.b16 %v198
    %v455 = vunpack.c.l.b16 %v199
    %v456 = vunpack.c.l.b16 %v200
    %v457 = vunpack.c.l.b16 %v201
    %v458 = vunpack.c.l.b16 %v202
    %v459 = vunpack.c.l.b16 %v203
    %v460 = vunpack.c.l.b16 %v204
    %v461 = vunpack.c.l.b16 %v205
    %v462 = vunpack.c.l.b16 %v206
    %v463 = vunpack.c.l.b16 %v207
    %v464 = vunpack.c.l.b16 %v208
    %v465 = vunpack.c.l.b16 %v209
    %v466 = vunpack.c.l.b16 %v210
    %v467 = vunpack.c.l.b16 %v211
    %v468 = vunpack.c.l.b16 %v212
    %v469 = vunpack.c.l.b16 %v213
    %v470 = vunpack.c.l.b16 %v214
    %v471 = vunpack.c.l.b16 %v215
    %v472 = vunpack.c.l.b16 %v216
    %v473 = vunpack.c.l.b16 %v217
    %v474 = vunpack.c.l.b16 %v218
    %v475 = vunpack.c.l.b16 %v219
    %v476 = vunpack.c.l.b16 %v220
    %v477 = vunpack.c.l.b16 %v221
    %v478 = vunpack.c.l.b16 %v222
    %v479 = vunpack.c.l.b16 %v223
    %v480 = vpack.c.b16 %v353, %v352
    %v481 = vpack.c.b16 %v355, %v354
    %v482 = vpack.c.b16 %v357, %v356
    %v483 = vpack.c.b16 %v359, %v358
    %v484 = vpack.c.b16 %v361, %v360
    %v485 = vpack.c.b16 %v363, %v362
    %v486 = vpack.c.b16 %v365, %v364
    %v487 = vpack.c.b16 %v367, %v366
    %v488 = vpack.c.b16 %v369, %v368
    %v489 = vpack.c.b16 %v371, %v370
    %v490 = vpack.c.b16 %v373, %v372
    %v491 = vpack.c.b16 %v375, %v374
    %v492 = vpack.c.b16 %v377, %v376
    %v493 = vpack.c.b16 %v379, %v378
    %v494 = vpack.c.b16 %v381, %v380
    %v495 = vpack.c.b16 %v383, %v382
    %v496 = vpack.c.b16 %v385, %v384
    %v497 = vpack.c.b16 %v387, %v386
    %v498 = vpack.c.b16 %v389, %v388
    %v499 = vpack.c.b16 %v391, %v390
    %v500 = vpack.c.b16 %v393, %v392
    %v501 = vpack.c.b16 %v395, %v394
    %v502 = vpack.c.b16 %v397, %v396
    %v503 = vpack.c.b16 %v399, %v398
    %v504 = vpack.c.b16 %v401, %v400
    %v505 = vpack.c.b16 %v403, %v402
    %v506 = vpack.c.b16 %v405, %v404
    %v507 = vpack.c.b16 %v407, %v406
    %v508 = vpack.c.b16 %v409, %v408
    %v509 = vpack.c.b16 %v411, %v410
    %v510 = vpack.c.b16 %v413, %v412
    %v511 = vpack.c.b16 %v415, %v414
    %v512 = vpack.c.b16 %v417, %v416
    %v513 = vpack.c.b16 %v419, %v418
    %v514 = vpack.c.b16 %v421, %v420
    %v515 = vpack.c.b16 %v423, %v422
    %v516 = vpack.c.b16 %v425, %v424
    %v517 = vpack.c.b16 %v427, %v426
    %v518 = vpack.c.b16 %v429, %v428
    %v519 = vpack.c.b16 %v431, %v430
    %v520 = vpack.c.b16 %v433, %v432
    %v521 = vpack.c.b16 %v435, %v434
    %v522 = vpack.c.b16 %v437, %v436
    %v523 = vpack.c.b16 %v439, %v438
    %v524 = vpack.c.b16 %v441, %v440
    %v525 = vpack.c.b16 %v443, %v442
    %v526 = vpack.c.b16 %v445, %v444
    %v527 = vpack.c.b16 %v447, %v446
    %v528 = vpack.c.b16 %v449, %v448
    %v529 = vpack.c.b16 %v451, %v450
    %v530 = vpack.c.b16 %v453, %v452
    %v531 = vpack.c.b16 %v455, %v454
    %v532 = vpack.c.b16 %v457, %v456
    %v533 = vpack.c.b16 %v459, %v458
    %v534 = vpack.c.b16 %v461, %v460
    %v535 = vpack.c.b16 %v463, %v462
    %v536 = vpack.c.b16 %v465, %v464
    %v537 = vpack.c.b16 %v467, %v466
    %v538 = vpack.c.b16 %v469, %v468
    %v539 = vpack.c.b16 %v471, %v470
    %v540 = vpack.c.b16 %v473, %v472
    %v541 = vpack.c.b16 %v475, %v474
    %v542 = vpack.c.b16 %v477, %v476
    %v543 = vpack.c.b16 %v479, %v478
    %608 = vmatprep.subr.bf16.mxu0 0
    %609 = vmatpush1.bf16.msra.mxu0 %v487
    %610 = vmatprep.subr.bf16.mxu0 0
    %611 = vmatpush1.bf16.msra.mxu0 %v486
    %612 = vmatprep.subr.bf16.mxu0 0
    %613 = vmatpush1.bf16.msra.mxu0 %v485
    %614 = vmatprep.subr.bf16.mxu0 0
    %615 = vmatpush1.bf16.msra.mxu0 %v484
    %616 = vmatprep.subr.bf16.mxu0 0
    %617 = vmatpush1.bf16.msra.mxu0 %v483
    %618 = vmatprep.subr.bf16.mxu0 0
    %619 = vmatpush1.bf16.msra.mxu0 %v482
    %620 = vmatprep.subr.bf16.mxu0 0
    %621 = vmatpush1.bf16.msra.mxu0 %v481
    %622 = vmatprep.subr.bf16.mxu0 0
    %623 = vmatpush1.bf16.msra.mxu0 %v480
    %624 = vmatprep.subr.bf16.mxu0 0
    %625 = vmatpush2.bf16.msra.mxu0 %v495
    %626 = vmatprep.subr.bf16.mxu0 0
    %627 = vmatpush2.bf16.msra.mxu0 %v494
    %628 = vmatprep.subr.bf16.mxu0 0
    %629 = vmatpush2.bf16.msra.mxu0 %v493
    %630 = vmatprep.subr.bf16.mxu0 0
    %631 = vmatpush2.bf16.msra.mxu0 %v492
    %632 = vmatprep.subr.bf16.mxu0 0
    %633 = vmatpush2.bf16.msra.mxu0 %v491
    %634 = vmatprep.subr.bf16.mxu0 0
    %635 = vmatpush2.bf16.msra.mxu0 %v490
    %636 = vmatprep.subr.bf16.mxu0 0
    %637 = vmatpush2.bf16.msra.mxu0 %v489
    %638 = vmatprep.subr.bf16.mxu0 0
    %639 = vmatpush2.bf16.msra.mxu0 %v488
    %640 = vmatprep.mubr.bf16.mxu0 %v88
    %641 = vmatmul.mubr.bf16.gmra.mxu0 %v87
    %v642 = vpop.f32.mrf.mxu0
    %v643 = vadd.f32 0.0, %v642
    %v644 = vpop.f32.mrf.mxu0
    %v645 = vpop.f32.mrf.mxu0
    %v646 = vpop.f32.mrf.mxu0
    %647 = vdwg.mxu0
    %648 = vmatprep.subr.bf16.mxu0 0
    %649 = vmatpush1.bf16.msra.mxu0 %v503
    %650 = vmatprep.subr.bf16.mxu0 0
    %651 = vmatpush1.bf16.msra.mxu0 %v502
    %652 = vmatprep.subr.bf16.mxu0 0
    %653 = vmatpush1.bf16.msra.mxu0 %v501
    %654 = vmatprep.subr.bf16.mxu0 0
    %655 = vmatpush1.bf16.msra.mxu0 %v500
    %656 = vmatprep.subr.bf16.mxu0 0
    %657 = vmatpush1.bf16.msra.mxu0 %v499
    %658 = vmatprep.subr.bf16.mxu0 0
    %659 = vmatpush1.bf16.msra.mxu0 %v498
    %660 = vmatprep.subr.bf16.mxu0 0
    %661 = vmatpush1.bf16.msra.mxu0 %v497
    %662 = vmatprep.subr.bf16.mxu0 0
    %663 = vmatpush1.bf16.msra.mxu0 %v496
    %664 = vmatprep.subr.bf16.mxu0 0
    %665 = vmatpush2.bf16.msra.mxu0 %v511
    %666 = vmatprep.subr.bf16.mxu0 0
    %667 = vmatpush2.bf16.msra.mxu0 %v510
    %668 = vmatprep.subr.bf16.mxu0 0
    %669 = vmatpush2.bf16.msra.mxu0 %v509
    %670 = vmatprep.subr.bf16.mxu0 0
    %671 = vmatpush2.bf16.msra.mxu0 %v508
    %672 = vmatprep.subr.bf16.mxu0 0
    %673 = vmatpush2.bf16.msra.mxu0 %v507
    %674 = vmatprep.subr.bf16.mxu0 0
    %675 = vmatpush2.bf16.msra.mxu0 %v506
    %676 = vmatprep.subr.bf16.mxu0 0
    %677 = vmatpush2.bf16.msra.mxu0 %v505
    %678 = vmatprep.subr.bf16.mxu0 0
    %679 = vmatpush2.bf16.msra.mxu0 %v504
    %680 = vmatprep.mubr.bf16.mxu0 %v90
    %681 = vmatmul.mubr.bf16.gmra.mxu0 %v89
    %v682 = vpop.f32.mrf.mxu0
    %v683 = vadd.f32 %v643, %v682
    %v684 = vpop.f32.mrf.mxu0
    %v685 = vpop.f32.mrf.mxu0
    %v686 = vpop.f32.mrf.mxu0
    %687 = vdwg.mxu0
    %688 = vmatprep.subr.bf16.mxu0 0
    %689 = vmatpush1.bf16.msra.mxu0 %v519
    %690 = vmatprep.subr.bf16.mxu0 0
    %691 = vmatpush1.bf16.msra.mxu0 %v518
    %692 = vmatprep.subr.bf16.mxu0 0
    %693 = vmatpush1.bf16.msra.mxu0 %v517
    %694 = vmatprep.subr.bf16.mxu0 0
    %695 = vmatpush1.bf16.msra.mxu0 %v516
    %696 = vmatprep.subr.bf16.mxu0 0
    %697 = vmatpush1.bf16.msra.mxu0 %v515
    %698 = vmatprep.subr.bf16.mxu0 0
    %699 = vmatpush1.bf16.msra.mxu0 %v514
    %700 = vmatprep.subr.bf16.mxu0 0
    %701 = vmatpush1.bf16.msra.mxu0 %v513
    %702 = vmatprep.subr.bf16.mxu0 0
    %703 = vmatpush1.bf16.msra.mxu0 %v512
    %704 = vmatprep.subr.bf16.mxu0 0
    %705 = vmatpush2.bf16.msra.mxu0 %v527
    %706 = vmatprep.subr.bf16.mxu0 0
    %707 = vmatpush2.bf16.msra.mxu0 %v526
    %708 = vmatprep.subr.bf16.mxu0 0
    %709 = vmatpush2.bf16.msra.mxu0 %v525
    %710 = vmatprep.subr.bf16.mxu0 0
    %711 = vmatpush2.bf16.msra.mxu0 %v524
    %712 = vmatprep.subr.bf16.mxu0 0
    %713 = vmatpush2.bf16.msra.mxu0 %v523
    %714 = vmatprep.subr.bf16.mxu0 0
    %715 = vmatpush2.bf16.msra.mxu0 %v522
    %716 = vmatprep.subr.bf16.mxu0 0
    %717 = vmatpush2.bf16.msra.mxu0 %v521
    %718 = vmatprep.subr.bf16.mxu0 0
    %719 = vmatpush2.bf16.msra.mxu0 %v520
    %720 = vmatprep.mubr.bf16.mxu0 %v92
    %721 = vmatmul.mubr.bf16.gmra.mxu0 %v91
    %v722 = vpop.f32.mrf.mxu0
    %v723 = vadd.f32 %v683, %v722
    %v724 = vpop.f32.mrf.mxu0
    %v725 = vpop.f32.mrf.mxu0
    %v726 = vpop.f32.mrf.mxu0
    %727 = vdwg.mxu0
    %728 = vmatprep.subr.bf16.mxu0 0
    %729 = vmatpush1.bf16.msra.mxu0 %v535
    %730 = vmatprep.subr.bf16.mxu0 0
    %731 = vmatpush1.bf16.msra.mxu0 %v534
    %732 = vmatprep.subr.bf16.mxu0 0
    %733 = vmatpush1.bf16.msra.mxu0 %v533
    %734 = vmatprep.subr.bf16.mxu0 0
    %735 = vmatpush1.bf16.msra.mxu0 %v532
    %736 = vmatprep.subr.bf16.mxu0 0
    %737 = vmatpush1.bf16.msra.mxu0 %v531
    %738 = vmatprep.subr.bf16.mxu0 0
    %739 = vmatpush1.bf16.msra.mxu0 %v530
    %740 = vmatprep.subr.bf16.mxu0 0
    %741 = vmatpush1.bf16.msra.mxu0 %v529
    %742 = vmatprep.subr.bf16.mxu0 0
    %743 = vmatpush1.bf16.msra.mxu0 %v528
    %744 = vmatprep.subr.bf16.mxu0 0
    %745 = vmatpush2.bf16.msra.mxu0 %v543
    %746 = vmatprep.subr.bf16.mxu0 0
    %747 = vmatpush2.bf16.msra.mxu0 %v542
    %748 = vmatprep.subr.bf16.mxu0 0
    %749 = vmatpush2.bf16.msra.mxu0 %v541
    %750 = vmatprep.subr.bf16.mxu0 0
    %751 = vmatpush2.bf16.msra.mxu0 %v540
    %752 = vmatprep.subr.bf16.mxu0 0
    %753 = vmatpush2.bf16.msra.mxu0 %v539
    %754 = vmatprep.subr.bf16.mxu0 0
    %755 = vmatpush2.bf16.msra.mxu0 %v538
    %756 = vmatprep.subr.bf16.mxu0 0
    %757 = vmatpush2.bf16.msra.mxu0 %v537
    %758 = vmatprep.subr.bf16.mxu0 0
    %759 = vmatpush2.bf16.msra.mxu0 %v536
    %760 = vmatprep.mubr.bf16.mxu0 %v94
    %761 = vmatmul.mubr.bf16.gmra.mxu0 %v93
    %v762 = vpop.f32.mrf.mxu0
    %v763 = vadd.f32 %v723, %v762
    %v764 = vpop.f32.mrf.mxu0
    %v765 = vpop.f32.mrf.mxu0
    %v766 = vpop.f32.mrf.mxu0
    %767 = vdwg.mxu0
    %v768 = vadd.f32 %v95, %v763
    %769 = vst [vmem:[#allocation2] sm:$0x3] %v768
    // Predicated region
    $region30: #{linear_model_forward.1} parent=1 // pred_check
      %p770 = pneg %p36
    $region31: #{linear_model_forward.1} parent=1 // pred_check_branch
      %772 = sbr.rel (%p770) target = $region33
    $region32: #{linear_model_forward.1} parent=1 // pred_region
      %v773 = vld [vmem:[#allocation2] sm:$0x3]
      %v774 = vld [vmem:[%s2] sm:$0x1]
      %v776 = vlaneseq
      %v777 = vshrl.u32 %v776, 7
      %v778 = vsub.s32 0, %v777
      %v779 = vrot.slane %v774, %v778
      %v781 = vadd.f32 %v773, %v779
      %v782 = vmax.f32 %v781, 0.0
      %v783 = vpack.c.bf16 %v782, %v782
      %v784 = vld [vmem:[%s3] sm:$0xf]
      %v785 = vld [vmem:[%s3 + $0x4] sm:$0xf]
      %v786 = vld [vmem:[%s3 + $0x8] sm:$0xf]
      %v787 = vld [vmem:[%s3 + $0xc] sm:$0xf]
      %v788 = vld [vmem:[%s3 + $0x10] sm:$0xf]
      %v789 = vld [vmem:[%s3 + $0x14] sm:$0xf]
      %v790 = vld [vmem:[%s3 + $0x18] sm:$0xf]
      %v791 = vld [vmem:[%s3 + $0x1c] sm:$0xf]
      %v792 = vld [vmem:[%s3 + $0x20] sm:$0xf]
      %v793 = vld [vmem:[%s3 + $0x24] sm:$0xf]
      %v794 = vld [vmem:[%s3 + $0x28] sm:$0xf]
      %v795 = vld [vmem:[%s3 + $0x2c] sm:$0xf]
      %v796 = vld [vmem:[%s3 + $0x30] sm:$0xf]
      %v797 = vld [vmem:[%s3 + $0x34] sm:$0xf]
      %v798 = vld [vmem:[%s3 + $0x38] sm:$0xf]
      %v799 = vld [vmem:[%s3 + $0x3c] sm:$0xf]
      %v800 = vld [vmem:[%s4] sm:$0x1]
      %v802 = vlaneseq
      %v803 = vshrl.u32 %v802, 7
      %v804 = vsub.s32 0, %v803
      %v805 = vrot.slane %v800, %v804
      %v823 = vunpack.c.l.b16 %v784
      %v824 = vunpack.c.l.b16 %v785
      %v825 = vunpack.c.l.b16 %v786
      %v826 = vunpack.c.l.b16 %v787
      %v827 = vunpack.c.l.b16 %v788
      %v828 = vunpack.c.l.b16 %v789
      %v829 = vunpack.c.l.b16 %v790
      %v830 = vunpack.c.l.b16 %v791
      %v831 = vunpack.c.l.b16 %v792
      %v832 = vunpack.c.l.b16 %v793
      %v833 = vunpack.c.l.b16 %v794
      %v834 = vunpack.c.l.b16 %v795
      %v835 = vunpack.c.l.b16 %v796
      %v836 = vunpack.c.l.b16 %v797
      %v837 = vunpack.c.l.b16 %v798
      %v838 = vunpack.c.l.b16 %v799
      %v839 = vpack.c.b16 %v824, %v823
      %v840 = vpack.c.b16 %v826, %v825
      %v841 = vpack.c.b16 %v828, %v827
      %v842 = vpack.c.b16 %v830, %v829
      %v843 = vpack.c.b16 %v832, %v831
      %v844 = vpack.c.b16 %v834, %v833
      %v845 = vpack.c.b16 %v836, %v835
      %v846 = vpack.c.b16 %v838, %v837
      %855 = vmatprep.subr.bf16.mxu0 0
      %856 = vmatpush1.bf16.msra.mxu0 %v846
      %857 = vmatprep.subr.bf16.mxu0 0
      %858 = vmatpush1.bf16.msra.mxu0 %v845
      %859 = vmatprep.subr.bf16.mxu0 0
      %860 = vmatpush1.bf16.msra.mxu0 %v844
      %861 = vmatprep.subr.bf16.mxu0 0
      %862 = vmatpush1.bf16.msra.mxu0 %v843
      %863 = vmatprep.subr.bf16.mxu0 0
      %864 = vmatpush1.bf16.msra.mxu0 %v842
      %865 = vmatprep.subr.bf16.mxu0 0
      %866 = vmatpush1.bf16.msra.mxu0 %v841
      %867 = vmatprep.subr.bf16.mxu0 0
      %868 = vmatpush1.bf16.msra.mxu0 %v840
      %869 = vmatprep.subr.bf16.mxu0 0
      %870 = vmatpush1.bf16.msra.mxu0 %v839
      %871 = vmatprep.subr.bf16.mxu0 0
      %872 = vmatpush2.bf16.msra.mxu0 0
      %873 = vmatprep.subr.bf16.mxu0 0
      %874 = vmatpush2.bf16.msra.mxu0 0
      %875 = vmatprep.subr.bf16.mxu0 0
      %876 = vmatpush2.bf16.msra.mxu0 0
      %877 = vmatprep.subr.bf16.mxu0 0
      %878 = vmatpush2.bf16.msra.mxu0 0
      %879 = vmatprep.subr.bf16.mxu0 0
      %880 = vmatpush2.bf16.msra.mxu0 0
      %881 = vmatprep.subr.bf16.mxu0 0
      %882 = vmatpush2.bf16.msra.mxu0 0
      %883 = vmatprep.subr.bf16.mxu0 0
      %884 = vmatpush2.bf16.msra.mxu0 0
      %885 = vmatprep.subr.bf16.mxu0 0
      %886 = vmatpush2.bf16.msra.mxu0 0
      %887 = vmatprep.mubr.bf16.mxu0 0
      %888 = vmatmul.mubr.bf16.gmra.mxu0 %v783
      %v889 = vpop.f32.mrf.mxu0
      %v890 = vadd.f32 %v805, %v889
      %v891 = vpop.f32.mrf.mxu0
      %v892 = vpop.f32.mrf.mxu0
      %v893 = vpop.f32.mrf.mxu0
      %894 = vdwg.mxu0
      %895 = vst [vmem:[#allocation6] sm:$0x3] %v890
    $region33: #{linear_model_forward.1} parent=1 // pred_fallthru
      _
    // Predicated region
    $region34: #{linear_model_forward.1} parent=1 // pred_check
      _
    $region35: #{linear_model_forward.1} parent=1 // pred_check_branch
      %897 = sbr.rel (0) target = $region37
    $region36: #{linear_model_forward.1} parent=1 // pred_region
      %s899 = ssub.s32 32, 32
      %900 = vsyncadd [#allocation5], %s899
      %s902 = sshll.u32 [#allocation6], 4
      %s903 = int_to_ptr.vmem [resolvable:$true] %s902
      %905 = dma.vmem_to_hbm [thread:$0]  %s903, 32, %s5, [#allocation5]
    $region37: #{linear_model_forward.1} parent=1 // pred_fallthru
      _
    // Predicated region
    $region38: #{linear_model_forward.1} parent=1 // pred_check
      _
    $region39: #{linear_model_forward.1} parent=1 // pred_check_branch
      %907 = sbr.rel (0) target = $region41
    $region40: #{linear_model_forward.1} parent=1 // pred_region
      %908 = dma.done [#allocation5], 32
    $region41: #{linear_model_forward.1} parent=1 // pred_fallthru
      _
    %909 = vsyncpa [#allocation4], 1
    %910 = vsyncpa [#allocation5], 1

</llo_original>
